<compile_context>
chip_gen: v5e
topology: v5e:2x2
jax: 0.10.0
libtpu: 0.0.40
codegen_flags: <defaults>
</compile_context>

<pallas_src>
import functools
import math

import jax
import jax.numpy as jnp
from jax import lax
from jax.experimental import pallas as pl
from jax.experimental.pallas import tpu as pltpu

LANE = 128           # TPU lane width: every feature dim is padded to this
NEG_BIG = -1e30      # mask value for padded logit lanes (avoids inf arithmetic)


# ----------------------------- Pallas kernel --------------------------------
def _fused_mlp_kernel(x_ref, w_ref, b_ref, o_ref, *, n_layers, n_classes):
    """Fused  (x @ W0 + b0 -> SiLU) ... (@ W_last + b_last -> masked LogSoftmax).

    x_ref : [TB, LANE]            bf16, zero-padded features
    w_ref : [L, LANE, LANE]       bf16, zero-padded weights (stored [in, out])
    b_ref : [L, 1, LANE]          f32,  zero-padded biases
    o_ref : [TB, LANE]            f32   (padded lanes hold ~NEG_BIG, sliced off
                                         by the wrapper)
    """
    h = x_ref[...]                                           # bf16 MXU operand
    y = None
    for i in range(n_layers):                                # statically unrolled
        w = w_ref[i]                                         # [LANE, LANE] bf16
        b = b_ref[i]                                         # [1, LANE]    f32
        y = jnp.dot(h, w, preferred_element_type=jnp.float32) + b   # f32 accum
        if i != n_layers - 1:
            # SiLU in f32; reciprocal goes to the otherwise-idle EUP slot.
            y = y * pl.reciprocal(1.0 + jnp.exp(-y), approx=True)
            # Padded lanes: zero weight cols + zero bias -> y == 0, SiLU(0) == 0,
            # so the padding stays clean for the next matmul.
            h = y.astype(jnp.bfloat16)

    # Numerically stable LogSoftmax over the real classes only.
    lane_idx = lax.broadcasted_iota(jnp.int32, y.shape, dimension=1)
    y = jnp.where(lane_idx < n_classes, y, NEG_BIG)
    m = jnp.max(y, axis=-1, keepdims=True)
    s = y - m
    o_ref[...] = s - jnp.log(jnp.sum(jnp.exp(s), axis=-1, keepdims=True))


# ------------------------------- wrapper -------------------------------------
def mlp_forward(params, x, *, n_classes, batch_tile=128):
    """Single fused pallas_call for the whole MLP. Returns [B, n_classes] f32."""
    B, d_in = x.shape
    n_layers = len(params)

    # Pad batch to a multiple of the tile and features to LANE (lane-dense).
    n_tiles = pl.cdiv(B, batch_tile)
    Bp = n_tiles * batch_tile
    x_p = jnp.zeros((Bp, LANE), jnp.bfloat16).at[:B, :d_in].set(
        x.astype(jnp.bfloat16))

    # Stack all layers into one weight tensor and one bias tensor.
    w_stack = jnp.zeros((n_layers, LANE, LANE), jnp.bfloat16)
    b_stack = jnp.zeros((n_layers, 1, LANE), jnp.float32)
    for i, (w, b) in enumerate(params):
        wi, wo = w.shape
        w_stack = w_stack.at[i, :wi, :wo].set(w.astype(jnp.bfloat16))
        b_stack = b_stack.at[i, :, :wo].set(b)

    in_specs = [
        pl.BlockSpec((batch_tile, LANE), lambda i: (i, 0)),          # batch tile
        pl.BlockSpec((n_layers, LANE, LANE), lambda i: (0, 0, 0)),   # resident W
        pl.BlockSpec((n_layers, 1, LANE), lambda i: (0, 0, 0)),      # resident b
    ]

    flops = 2 * Bp * n_layers * LANE * LANE
    bytes_accessed = (x_p.size * x_p.dtype.itemsize
                      + w_stack.size * w_stack.dtype.itemsize
                      + b_stack.size * b_stack.dtype.itemsize
                      + Bp * LANE * 4)

    kernel = functools.partial(_fused_mlp_kernel,
                               n_layers=n_layers, n_classes=n_classes)

    out_p = pl.pallas_call(
        kernel,
        out_shape=jax.ShapeDtypeStruct((Bp, LANE), jnp.float32),
        grid_spec=pltpu.PrefetchScalarGridSpec(
            num_scalar_prefetch=0,
            grid=(n_tiles,),
            in_specs=in_specs,
            out_specs=pl.BlockSpec((batch_tile, LANE), lambda i: (i, 0)),
        ),
        compiler_params=pltpu.CompilerParams(
            dimension_semantics=("parallel",),       # shard batch over v7x's 2 TCs
            vmem_limit_bytes=32 * 1024 * 1024,
        ),
        cost_estimate=pl.CostEstimate(
            flops=flops,
            transcendentals=Bp * LANE * n_layers,
            bytes_accessed=bytes_accessed),
    )(x_p, w_stack, b_stack)

    return out_p[:B, :n_classes]


# ------------------------------- params --------------------------------------
def init_mlp_params(key, arch):
    """Kaiming-normal weights (fan_in, gain=sqrt(2)), zero bias.
    Weights stored as [in, out] (transpose of PyTorch's [out, in])."""
    params = []
    for l_in, l_out in zip(arch[:-1], arch[1:]):
        key, sub = jax.random.split(key)
        std = math.sqrt(2.0 / l_in)
        w = std * jax.random.normal(sub, (l_in, l_out), dtype=jnp.float32)
        b = jnp.zeros((1, l_out), dtype=jnp.float32)
        params.append((w, b))
    return params


# --------------------------------- main ---------------------------------------
if __name__ == "__main__":
    # Signal/background classifier: 16 input features, 2 hidden layers of 32,
    # 2 output classes with LogSoftmax. Batch sized to exercise the batch grid.
    arch = [16, 32, 32, 2]
    batch = 256

    key = jax.random.PRNGKey(0)
    pkey, xkey = jax.random.split(key)

    params = init_mlp_params(pkey, arch)
    x = jax.random.normal(xkey, (batch, arch[0]), dtype=jnp.float32)

    fwd = jax.jit(functools.partial(mlp_forward, n_classes=arch[-1],
                                    batch_tile=128))
    out = fwd(params, x)
    out = jax.block_until_ready(out)

    # Plain-JAX reference with the same bf16 MXU-operand casts / f32 epilogue.
    ref = x
    for i, (w, b) in enumerate(params):
        ref = jnp.dot(ref.astype(jnp.bfloat16), w.astype(jnp.bfloat16),
                      preferred_element_type=jnp.float32) + b
        if i != len(params) - 1:
            ref = ref * jax.nn.sigmoid(ref)
        else:
            ref = jax.nn.log_softmax(ref, axis=-1)

    assert out.shape == (batch, arch[-1])
    max_err = float(jnp.max(jnp.abs(out - ref)))
    assert jnp.allclose(out, ref, atol=5e-2, rtol=5e-2), f"max abs err {max_err}"

    print("KERNEL_OK")
</pallas_src>

<mosaic_0001>
module attributes {stable_mosaic.version = 11 : i64} {
  func.func @_fused_mlp_kernel(%arg0: i32, %arg1: memref<128x128xbf16, #tpu.memory_space<vmem>>, %arg2: memref<3x128x128xbf16, #tpu.memory_space<vmem>>, %arg3: memref<3x1x128xf32, #tpu.memory_space<vmem>>, %arg4: memref<128x128xf32, #tpu.memory_space<vmem>>) attributes {dimension_semantics = [#tpu.dimension_semantics<parallel>], iteration_bounds = array<i64: 2>, scalar_prefetch = 0 : i64, scratch_operands = 0 : i64, tpu.core_type = #tpu.core_type<tc>, window_params = [{transform_indices = @transform_0, window_bounds = array<i64: 128, 128>}, {pipeline_mode = #tpu.pipeline_mode<synchronous>, transform_indices = @transform_1, window_bounds = array<i64: 3, 128, 128>}, {pipeline_mode = #tpu.pipeline_mode<synchronous>, transform_indices = @transform_2, window_bounds = array<i64: 3, 1, 128>}, {transform_indices = @transform_3, window_bounds = array<i64: 128, 128>}]} {
    %c0 = arith.constant 0 : index
    %c0_0 = arith.constant 0 : index
    %0 = vector.load %arg1[%c0, %c0_0] : memref<128x128xbf16, #tpu.memory_space<vmem>>, vector<128x128xbf16>
    %c0_1 = arith.constant 0 : index
    %c0_2 = arith.constant 0 : index
    %c0_3 = arith.constant 0 : index
    %1 = vector.load %arg2[%c0_1, %c0_2, %c0_3] : memref<3x128x128xbf16, #tpu.memory_space<vmem>>, vector<1x128x128xbf16>
    %2 = vector.shape_cast %1 : vector<1x128x128xbf16> to vector<128x128xbf16>
    %c0_4 = arith.constant 0 : index
    %c0_5 = arith.constant 0 : index
    %c0_6 = arith.constant 0 : index
    %3 = vector.load %arg3[%c0_4, %c0_5, %c0_6] : memref<3x1x128xf32, #tpu.memory_space<vmem>>, vector<1x1x128xf32>
    %4 = vector.shape_cast %3 : vector<1x1x128xf32> to vector<1x128xf32>
    %cst = arith.constant dense<0.000000e+00> : vector<128x128xf32>
    %5 = tpu.matmul %0, %2, %cst {dimension_numbers = #tpu.dot_dimension_numbers<[1], [0], [0], [1], [0, 0, 1, 1], [], []>} : vector<128x128xbf16>, vector<128x128xbf16>, vector<128x128xf32> -> vector<128x128xf32>
    %6 = vector.broadcast %4 : vector<1x128xf32> to vector<128x128xf32>
    %7 = arith.addf %5, %6 : vector<128x128xf32>
    %cst_7 = arith.constant 0.000000e+00 : f32
    %8 = vector.broadcast %cst_7 : f32 to vector<128x128xf32>
    %9 = arith.subf %8, %7 : vector<128x128xf32>
    %10 = math.exp %9 : vector<128x128xf32>
    %cst_8 = arith.constant 1.000000e+00 : f32
    %11 = vector.broadcast %cst_8 : f32 to vector<128x128xf32>
    %12 = arith.addf %11, %10 : vector<128x128xf32>
    %13 = tpu.reciprocal %12 {approx = true} : vector<128x128xf32> -> vector<128x128xf32>
    %14 = arith.mulf %7, %13 : vector<128x128xf32>
    %15 = arith.truncf %14 : vector<128x128xf32> to vector<128x128xbf16>
    %c1 = arith.constant 1 : index
    %c0_9 = arith.constant 0 : index
    %c0_10 = arith.constant 0 : index
    %16 = vector.load %arg2[%c1, %c0_9, %c0_10] : memref<3x128x128xbf16, #tpu.memory_space<vmem>>, vector<1x128x128xbf16>
    %17 = vector.shape_cast %16 : vector<1x128x128xbf16> to vector<128x128xbf16>
    %c1_11 = arith.constant 1 : index
    %c0_12 = arith.constant 0 : index
    %c0_13 = arith.constant 0 : index
    %18 = vector.load %arg3[%c1_11, %c0_12, %c0_13] : memref<3x1x128xf32, #tpu.memory_space<vmem>>, vector<1x1x128xf32>
    %19 = vector.shape_cast %18 : vector<1x1x128xf32> to vector<1x128xf32>
    %cst_14 = arith.constant dense<0.000000e+00> : vector<128x128xf32>
    %20 = tpu.matmul %15, %17, %cst_14 {dimension_numbers = #tpu.dot_dimension_numbers<[1], [0], [0], [1], [0, 0, 1, 1], [], []>} : vector<128x128xbf16>, vector<128x128xbf16>, vector<128x128xf32> -> vector<128x128xf32>
    %21 = vector.broadcast %19 : vector<1x128xf32> to vector<128x128xf32>
    %22 = arith.addf %20, %21 : vector<128x128xf32>
    %cst_15 = arith.constant 0.000000e+00 : f32
    %23 = vector.broadcast %cst_15 : f32 to vector<128x128xf32>
    %24 = arith.subf %23, %22 : vector<128x128xf32>
    %25 = math.exp %24 : vector<128x128xf32>
    %cst_16 = arith.constant 1.000000e+00 : f32
    %26 = vector.broadcast %cst_16 : f32 to vector<128x128xf32>
    %27 = arith.addf %26, %25 : vector<128x128xf32>
    %28 = tpu.reciprocal %27 {approx = true} : vector<128x128xf32> -> vector<128x128xf32>
    %29 = arith.mulf %22, %28 : vector<128x128xf32>
    %30 = arith.truncf %29 : vector<128x128xf32> to vector<128x128xbf16>
    %c2 = arith.constant 2 : index
    %c0_17 = arith.constant 0 : index
    %c0_18 = arith.constant 0 : index
    %31 = vector.load %arg2[%c2, %c0_17, %c0_18] : memref<3x128x128xbf16, #tpu.memory_space<vmem>>, vector<1x128x128xbf16>
    %32 = vector.shape_cast %31 : vector<1x128x128xbf16> to vector<128x128xbf16>
    %c2_19 = arith.constant 2 : index
    %c0_20 = arith.constant 0 : index
    %c0_21 = arith.constant 0 : index
    %33 = vector.load %arg3[%c2_19, %c0_20, %c0_21] : memref<3x1x128xf32, #tpu.memory_space<vmem>>, vector<1x1x128xf32>
    %34 = vector.shape_cast %33 : vector<1x1x128xf32> to vector<1x128xf32>
    %cst_22 = arith.constant dense<0.000000e+00> : vector<128x128xf32>
    %35 = tpu.matmul %30, %32, %cst_22 {dimension_numbers = #tpu.dot_dimension_numbers<[1], [0], [0], [1], [0, 0, 1, 1], [], []>} : vector<128x128xbf16>, vector<128x128xbf16>, vector<128x128xf32> -> vector<128x128xf32>
    %36 = vector.broadcast %34 : vector<1x128xf32> to vector<128x128xf32>
    %37 = arith.addf %35, %36 : vector<128x128xf32>
    %38 = tpu.iota {dimensions = array<i32: 1>} : vector<128x128xi32>
    %c2_i32 = arith.constant 2 : i32
    %39 = vector.broadcast %c2_i32 : i32 to vector<128x128xi32>
    %40 = arith.cmpi slt, %38, %39 : vector<128x128xi32>
    %cst_23 = arith.constant -1.000000e+30 : f32
    %41 = vector.broadcast %cst_23 : f32 to vector<128x128xf32>
    %42 = arith.select %40, %37, %41 : vector<128x128xi1>, vector<128x128xf32>
    %cst_24 = arith.constant dense<0xFF800000> : vector<128xf32>
    %43 = vector.multi_reduction <maximumf>, %42, %cst_24 [1] : vector<128x128xf32> to vector<128xf32>
    %44 = vector.shape_cast %43 : vector<128xf32> to vector<128x1xf32>
    %45 = vector.broadcast %44 : vector<128x1xf32> to vector<128x128xf32>
    %46 = arith.subf %42, %45 : vector<128x128xf32>
    %47 = math.exp %46 : vector<128x128xf32>
    %cst_25 = arith.constant dense<0.000000e+00> : vector<128xf32>
    %48 = vector.multi_reduction <add>, %47, %cst_25 [1] : vector<128x128xf32> to vector<128xf32>
    %49 = vector.shape_cast %48 : vector<128xf32> to vector<128x1xf32>
    %50 = math.log %49 : vector<128x1xf32>
    %51 = vector.broadcast %50 : vector<128x1xf32> to vector<128x128xf32>
    %52 = arith.subf %46, %51 : vector<128x128xf32>
    %c0_26 = arith.constant 0 : index
    %c0_27 = arith.constant 0 : index
    %53 = vector.load %arg4[%c0_26, %c0_27] : memref<128x128xf32, #tpu.memory_space<vmem>>, vector<128x128xf32>
    tpu.vector_store %arg4[%c0_26, %c0_27], %52 {strides = array<i32>} : memref<128x128xf32, #tpu.memory_space<vmem>>, vector<128x128xf32>,
    return
  }
  func.func @transform_0(%arg0: i32) -> (i32, i32) {
    %c0_i32 = arith.constant 0 : i32
    %c0_i32_0 = arith.constant 0 : i32
    return %arg0, %c0_i32 : i32, i32
  }
  func.func @transform_1(%arg0: i32) -> (i32, i32, i32) {
    %c0_i32 = arith.constant 0 : i32
    %c0_i32_0 = arith.constant 0 : i32
    %c0_i32_1 = arith.constant 0 : i32
    %c0_i32_2 = arith.constant 0 : i32
    return %c0_i32, %c0_i32_0, %c0_i32_1 : i32, i32, i32
  }
  func.func @transform_2(%arg0: i32) -> (i32, i32, i32) {
    %c0_i32 = arith.constant 0 : i32
    %c0_i32_0 = arith.constant 0 : i32
    %c0_i32_1 = arith.constant 0 : i32
    %c0_i32_2 = arith.constant 0 : i32
    return %c0_i32, %c0_i32_0, %c0_i32_1 : i32, i32, i32
  }
  func.func @transform_3(%arg0: i32) -> (i32, i32) {
    %c0_i32 = arith.constant 0 : i32
    %c0_i32_0 = arith.constant 0 : i32
    return %arg0, %c0_i32 : i32, i32
  }
}

</mosaic_0001>

<llo_original>
// kernel: mlp_forward.1
$region0: #{mlp_forward.1}
  #allocation0 [shape = 'u32[]', space=smem, size = 0x4, offset = 0x4, fixed_abs, tag = 'smem constant byte address 0x4 - core index']
  #allocation1 [shape = 'u32[72,128]{1,0:T(1,128)}', space=vmem, size = 0x9000, scoped, tag = 'internal scratch']
  %s0 = inlined_call_operand.vmem [shape: bf16[256,128], index: 0, kind: input, shape index: {}]
  %s1 = inlined_call_operand.vmem [shape: bf16[3,128,128], index: 1, kind: input, shape index: {}]
  %s2 = inlined_call_operand.vmem [shape: f32[3,1,128], index: 2, kind: input, shape index: {}]
  %s3 = inlined_call_operand.vmem [shape: f32[256,128], index: 3, kind: output, shape index: {}]
  %s4 = sld [smem:[#allocation0]]
  $region45: #{mlp_forward.1} parent=0
    _
  %s6 = ssub.s32 1, %s4
  %s7 = scalar_select 0, %s6, %s4
  loop: start=0, step=1, limit=4
  $region2: #{mlp_forward.1} parent=0 // loop_pre_header
    _
  $region3: #{mlp_forward.1} parent=0 // loop_header
    %s9 = sphi 0, %s13
    %p10 = scmp.ge.s32.totalorder %s9, 4
    %s19 = sphi 0, %s21
    %s22 = sphi 0, %s19
    %s23 = sphi 0, %s22
    %s39 = sphi 0, %s23
    %s43 = sphi 0, %s43
    %s45 = sphi 0, %s43
    %s46 = sphi 0, %s45
    %s60 = sphi 0, %s46
    %s64 = sphi 0, %s64
    %s66 = sphi 0, %s64
    %s67 = sphi 0, %s66
    %s81 = sphi 0, %s67
    %s87 = sphi 0, %s89
    %s90 = sphi 0, %s87
    %s91 = sphi 0, %s90
    %s107 = sphi 0, %s91
  $region4: #{mlp_forward.1} parent=0 // loop_header_branch
    %12 = sbr.rel (%p10) target = $region8
  $region5: #{mlp_forward.1} parent=0 // loop_body
    %s14 = ssub.s32 %s9, 1
    %s15 = ssub.s32 %s9, 2
    %s16 = sadd.s32 %s9, 1
    %s17 = ssub.s32 %s9, %s16
    %p18 = scmp.eq.s32.totalorder %s17, 0
    %s20 = sadd.s32 %s19, 1
    %s21 = scalar_select %p18, %s19, %s20
    %p24 = pneg %p18
    %p25 = scmp.eq.s32.totalorder %s9, 1
    %p26 = por %p24, %p25
    %p27 = scmp.ne.s32.totalorder %s19, %s22
    %p28 = scmp.eq.s32.totalorder %s9, 0
    %p29 = por %p27, %p28
    %p30 = scmp.ne.s32.totalorder %s19, %s22
    %p31 = scmp.eq.s32.totalorder %s14, 1
    %p32 = por %p30, %p31
    %p33 = scmp.ne.s32.totalorder %s22, %s23
    %p34 = scmp.eq.s32.totalorder %s14, 0
    %p35 = por %p33, %p34
    %p36 = scmp.ne.s32.totalorder %s22, %s23
    %p37 = scmp.eq.s32.totalorder %s15, 1
    %p38 = por %p36, %p37
    %p40 = scmp.ne.s32.totalorder %s23, %s39
    %p41 = scmp.eq.s32.totalorder %s15, 0
    %p42 = por %p40, %p41
    %s44 = sadd.s32 %s43, 1
    %p47 = scmp.eq.s32.totalorder %s9, 1
    %p48 = scmp.ne.s32.totalorder %s43, %s45
    %p49 = scmp.eq.s32.totalorder %s9, 0
    %p50 = por %p48, %p49
    %p51 = scmp.ne.s32.totalorder %s43, %s45
    %p52 = scmp.eq.s32.totalorder %s14, 1
    %p53 = por %p51, %p52
    %p54 = scmp.ne.s32.totalorder %s45, %s46
    %p55 = scmp.eq.s32.totalorder %s14, 0
    %p56 = por %p54, %p55
    %p57 = scmp.ne.s32.totalorder %s45, %s46
    %p58 = scmp.eq.s32.totalorder %s15, 1
    %p59 = por %p57, %p58
    %p61 = scmp.ne.s32.totalorder %s46, %s60
    %p62 = scmp.eq.s32.totalorder %s15, 0
    %p63 = por %p61, %p62
    %s65 = sadd.s32 %s64, 1
    %p68 = scmp.eq.s32.totalorder %s9, 1
    %p69 = scmp.ne.s32.totalorder %s64, %s66
    %p70 = scmp.eq.s32.totalorder %s9, 0
    %p71 = por %p69, %p70
    %p72 = scmp.ne.s32.totalorder %s64, %s66
    %p73 = scmp.eq.s32.totalorder %s14, 1
    %p74 = por %p72, %p73
    %p75 = scmp.ne.s32.totalorder %s66, %s67
    %p76 = scmp.eq.s32.totalorder %s14, 0
    %p77 = por %p75, %p76
    %p78 = scmp.ne.s32.totalorder %s66, %s67
    %p79 = scmp.eq.s32.totalorder %s15, 1
    %p80 = por %p78, %p79
    %p82 = scmp.ne.s32.totalorder %s67, %s81
    %p83 = scmp.eq.s32.totalorder %s15, 0
    %p84 = por %p82, %p83
    %s85 = ssub.s32 %s9, %s16
    %p86 = scmp.eq.s32.totalorder %s85, 0
    %s88 = sadd.s32 %s87, 1
    %s89 = scalar_select %p86, %s87, %s88
    %p92 = pneg %p86
    %p93 = scmp.eq.s32.totalorder %s9, 1
    %p94 = por %p92, %p93
    %p95 = scmp.ne.s32.totalorder %s87, %s90
    %p96 = scmp.eq.s32.totalorder %s9, 0
    %p97 = por %p95, %p96
    %p98 = scmp.ne.s32.totalorder %s87, %s90
    %p99 = scmp.eq.s32.totalorder %s14, 1
    %p100 = por %p98, %p99
    %p101 = scmp.ne.s32.totalorder %s90, %s91
    %p102 = scmp.eq.s32.totalorder %s14, 0
    %p103 = por %p101, %p102
    %p104 = scmp.ne.s32.totalorder %s90, %s91
    %p105 = scmp.eq.s32.totalorder %s15, 1
    %p106 = por %p104, %p105
    %p108 = scmp.ne.s32.totalorder %s91, %s107
    %p109 = scmp.eq.s32.totalorder %s15, 0
    %p110 = por %p108, %p109
    %p111 = scmp.le.s32.totalorder 1, %s9
    %p112 = scmp.lt.s32.totalorder %s9, 3
    %p113 = pnand %p111, %p112
    %p114 = pneg %p113
    // Predicated region
    $region9: #{mlp_forward.1} parent=5 // pred_check
      _
    $region10: #{mlp_forward.1} parent=5 // pred_check_branch
      %116 = sbr.rel (%p113) target = $region12
    $region11: #{mlp_forward.1} parent=5 // pred_region
      %s117 = ssub.s32 %s9, 1
      // Predicated region
      $region13: #{mlp_forward.1} parent=11 // pred_check
        %p118 = pneg %p56
      $region14: #{mlp_forward.1} parent=11 // pred_check_branch
        %120 = sbr.rel (%p118) target = $region16
      $region15: #{mlp_forward.1} parent=11 // pred_region
        _
      $region16: #{mlp_forward.1} parent=11 // pred_fallthru
        _
      // Predicated region
      $region17: #{mlp_forward.1} parent=11 // pred_check
        %p121 = pneg %p77
      $region18: #{mlp_forward.1} parent=11 // pred_check_branch
        %123 = sbr.rel (%p121) target = $region20
      $region19: #{mlp_forward.1} parent=11 // pred_region
        _
      $region20: #{mlp_forward.1} parent=11 // pred_fallthru
        _
    $region12: #{mlp_forward.1} parent=5 // pred_fallthru
      _
    %p124 = scmp.lt.s32.totalorder %s9, 2
    // Predicated region
    $region21: #{mlp_forward.1} parent=5 // pred_check
      %p125 = pneg %p124
    $region22: #{mlp_forward.1} parent=5 // pred_check_branch
      %127 = sbr.rel (%p125) target = $region24
    $region23: #{mlp_forward.1} parent=5 // pred_region
      // Predicated region
      $region25: #{mlp_forward.1} parent=23 // pred_check
        %p128 = pneg %p29
      $region26: #{mlp_forward.1} parent=23 // pred_check_branch
        %130 = sbr.rel (%p128) target = $region28
      $region27: #{mlp_forward.1} parent=23 // pred_region
        %s131 = smul.u32 16, %s9
        %p132 = scmp.lt.s32.totalorder %s131, 31
        %s133 = scalar_select %p132, %s131, 31
        %s134 = smul.addr %s133, 4
        %s135 = scalar_lea.vmem %s0, %s134
        %s136 = smul.u32 16, %s9
      $region28: #{mlp_forward.1} parent=23 // pred_fallthru
        _
    $region24: #{mlp_forward.1} parent=5 // pred_fallthru
      _
    %p137 = scmp.le.s32.totalorder 1, %s9
    %p138 = scmp.lt.s32.totalorder %s9, 3
    %p139 = pnand %p137, %p138
    %p140 = pneg %p139
    // Predicated region
    $region29: #{mlp_forward.1} parent=5 // pred_check
      _
    $region30: #{mlp_forward.1} parent=5 // pred_check_branch
      %142 = sbr.rel (%p139) target = $region32
    $region31: #{mlp_forward.1} parent=5 // pred_region
      %s143 = ssub.s32 %s9, 1
      %s144 = smul.u32 16, %s14
      %p145 = scmp.lt.s32.totalorder %s144, 31
      %s146 = scalar_select %p145, %s144, 31
      %s147 = smul.addr %s146, 4
      %s148 = scalar_lea.vmem %s0, %s147
      %p149 = pneg %p35
      %p150 = pneg %p32
      %p151 = pneg %p56
      %p152 = pneg %p53
      %p153 = pneg %p77
      %p154 = pneg %p74
      %p155 = pneg %p103
      %p156 = pneg %p100
      %s157 = smul.u32 16, %s14
      %p158 = scmp.lt.s32.totalorder %s157, 31
      %s159 = scalar_select %p158, %s157, 31
      %s160 = smul.addr %s159, 8
      %s161 = scalar_lea.vmem %s3, %s160
      %s162 = smul.u32 16, %s14
      %p163 = scmp.lt.s32.totalorder %s162, 31
      %s164 = scalar_select %p163, %s162, 31
      %s165 = smul.addr %s164, 4
      %s166 = scalar_lea.vmem %s0, %s165
      %s167 = smul.u32 16, %s14
      %s168 = smul.u32 16, %s14
      %p169 = scmp.lt.s32.totalorder %s168, 31
      %s170 = scalar_select %p169, %s168, 31
      %s171 = smul.addr %s170, 8
      %s172 = scalar_lea.vmem %s3, %s171
      %s173 = smul.u32 16, %s14
      %v174 = vld [vmem:[%s166] sm:$0xf]
      %v175 = vld [vmem:[%s166 + $0x4] sm:$0xf]
      %v176 = vld [vmem:[%s166 + $0x8] sm:$0xf]
      %v177 = vld [vmem:[%s166 + $0xc] sm:$0xf]
      %v178 = vld [vmem:[%s166 + $0x10] sm:$0xf]
      %v179 = vld [vmem:[%s166 + $0x14] sm:$0xf]
      %v180 = vld [vmem:[%s166 + $0x18] sm:$0xf]
      %v181 = vld [vmem:[%s166 + $0x1c] sm:$0xf]
      %v182 = vld [vmem:[%s166 + $0x20] sm:$0xf]
      %v183 = vld [vmem:[%s166 + $0x24] sm:$0xf]
      %v184 = vld [vmem:[%s166 + $0x28] sm:$0xf]
      %v185 = vld [vmem:[%s166 + $0x2c] sm:$0xf]
      %v186 = vld [vmem:[%s166 + $0x30] sm:$0xf]
      %v187 = vld [vmem:[%s166 + $0x34] sm:$0xf]
      %v188 = vld [vmem:[%s166 + $0x38] sm:$0xf]
      %v189 = vld [vmem:[%s166 + $0x3c] sm:$0xf]
      %v190 = vld [vmem:[%s1] sm:$0xf]
      %v191 = vld [vmem:[%s1 + $0x4] sm:$0xf]
      %v192 = vld [vmem:[%s1 + $0x8] sm:$0xf]
      %v193 = vld [vmem:[%s1 + $0xc] sm:$0xf]
      %v194 = vld [vmem:[%s1 + $0x10] sm:$0xf]
      %v195 = vld [vmem:[%s1 + $0x14] sm:$0xf]
      %v196 = vld [vmem:[%s1 + $0x18] sm:$0xf]
      %v197 = vld [vmem:[%s1 + $0x1c] sm:$0xf]
      %v198 = vld [vmem:[%s1 + $0x20] sm:$0xf]
      %v199 = vld [vmem:[%s1 + $0x24] sm:$0xf]
      %v200 = vld [vmem:[%s1 + $0x28] sm:$0xf]
      %v201 = vld [vmem:[%s1 + $0x2c] sm:$0xf]
      %v202 = vld [vmem:[%s1 + $0x30] sm:$0xf]
      %v203 = vld [vmem:[%s1 + $0x34] sm:$0xf]
      %v204 = vld [vmem:[%s1 + $0x38] sm:$0xf]
      %v205 = vld [vmem:[%s1 + $0x3c] sm:$0xf]
      %v206 = vld [vmem:[%s2] sm:$0x1]
      %v208 = vperm.slane %v206, 0
      %v226 = vunpack.c.l.b16 %v174
      %v227 = vunpack.c.l.b16 %v175
      %v228 = vunpack.c.l.b16 %v176
      %v229 = vunpack.c.l.b16 %v177
      %v230 = vunpack.c.l.b16 %v178
      %v231 = vunpack.c.l.b16 %v179
      %v232 = vunpack.c.l.b16 %v180
      %v233 = vunpack.c.l.b16 %v181
      %v234 = vunpack.c.l.b16 %v182
      %v235 = vunpack.c.l.b16 %v183
      %v236 = vunpack.c.l.b16 %v184
      %v237 = vunpack.c.l.b16 %v185
      %v238 = vunpack.c.l.b16 %v186
      %v239 = vunpack.c.l.b16 %v187
      %v240 = vunpack.c.l.b16 %v188
      %v241 = vunpack.c.l.b16 %v189
      %v242 = vpack.c.b16 %v227, %v226
      %v243 = vpack.c.b16 %v229, %v228
      %v244 = vpack.c.b16 %v231, %v230
      %v245 = vpack.c.b16 %v233, %v232
      %v246 = vpack.c.b16 %v235, %v234
      %v247 = vpack.c.b16 %v237, %v236
      %v248 = vpack.c.b16 %v239, %v238
      %v249 = vpack.c.b16 %v241, %v240
      %v274 = vunpack.c.l.b16 %v190
      %v275 = vunpack.c.l.b16 %v191
      %v276 = vunpack.c.l.b16 %v192
      %v277 = vunpack.c.l.b16 %v193
      %v278 = vunpack.c.l.b16 %v194
      %v279 = vunpack.c.l.b16 %v195
      %v280 = vunpack.c.l.b16 %v196
      %v281 = vunpack.c.l.b16 %v197
      %v282 = vunpack.c.l.b16 %v198
      %v283 = vunpack.c.l.b16 %v199
      %v284 = vunpack.c.l.b16 %v200
      %v285 = vunpack.c.l.b16 %v201
      %v286 = vunpack.c.l.b16 %v202
      %v287 = vunpack.c.l.b16 %v203
      %v288 = vunpack.c.l.b16 %v204
      %v289 = vunpack.c.l.b16 %v205
      %v290 = vpack.c.b16 %v275, %v274
      %v291 = vpack.c.b16 %v277, %v276
      %v292 = vpack.c.b16 %v279, %v278
      %v293 = vpack.c.b16 %v281, %v280
      %v294 = vpack.c.b16 %v283, %v282
      %v295 = vpack.c.b16 %v285, %v284
      %v296 = vpack.c.b16 %v287, %v286
      %v297 = vpack.c.b16 %v289, %v288
      %306 = vmatpush.bf16.msra.mxu0 %v297
      %307 = vmatpush.bf16.msra.mxu0 %v296
      %308 = vmatpush.bf16.msra.mxu0 %v295
      %309 = vmatpush.bf16.msra.mxu0 %v294
      %310 = vmatpush.bf16.msra.mxu0 %v293
      %311 = vmatpush.bf16.msra.mxu0 %v292
      %312 = vmatpush.bf16.msra.mxu0 %v291
      %313 = vmatpush.bf16.msra.mxu0 %v290
      %314 = vmatmul.bf16.gmra.mxu0 %v242
      %v315 = vpop.f32.mrf.mxu0
      %v316 = vadd.f32 %v208, %v315
      %v317 = vpop.f32.mrf.mxu0
      %v318 = vadd.f32 %v208, %v317
      %319 = vmatmul.bf16.gmra.mxu0 %v243
      %v320 = vpop.f32.mrf.mxu0
      %v321 = vadd.f32 %v208, %v320
      %v322 = vpop.f32.mrf.mxu0
      %v323 = vadd.f32 %v208, %v322
      %324 = vmatmul.bf16.gmra.mxu0 %v244
      %v325 = vpop.f32.mrf.mxu0
      %v326 = vadd.f32 %v208, %v325
      %v327 = vpop.f32.mrf.mxu0
      %v328 = vadd.f32 %v208, %v327
      %329 = vmatmul.bf16.gmra.mxu0 %v245
      %v330 = vpop.f32.mrf.mxu0
      %v331 = vadd.f32 %v208, %v330
      %v332 = vpop.f32.mrf.mxu0
      %v333 = vadd.f32 %v208, %v332
      %334 = vmatmul.bf16.gmra.mxu0 %v246
      %v335 = vpop.f32.mrf.mxu0
      %v336 = vadd.f32 %v208, %v335
      %v337 = vpop.f32.mrf.mxu0
      %v338 = vadd.f32 %v208, %v337
      %339 = vmatmul.bf16.gmra.mxu0 %v247
      %v340 = vpop.f32.mrf.mxu0
      %v341 = vadd.f32 %v208, %v340
      %v342 = vpop.f32.mrf.mxu0
      %v343 = vadd.f32 %v208, %v342
      %344 = vmatmul.bf16.gmra.mxu0 %v248
      %v345 = vpop.f32.mrf.mxu0
      %v346 = vadd.f32 %v208, %v345
      %v347 = vpop.f32.mrf.mxu0
      %v348 = vadd.f32 %v208, %v347
      %349 = vmatmul.bf16.gmra.mxu0 %v249
      %v350 = vpop.f32.mrf.mxu0
      %v351 = vadd.f32 %v208, %v350
      %v352 = vpop.f32.mrf.mxu0
      %v353 = vadd.f32 %v208, %v352
      %354 = vdwg.mxu0
      %v355 = vsub.f32 0.0, %v316
      %v356 = vsub.f32 0.0, %v318
      %v357 = vsub.f32 0.0, %v321
      %v358 = vsub.f32 0.0, %v323
      %v359 = vsub.f32 0.0, %v326
      %v360 = vsub.f32 0.0, %v328
      %v361 = vsub.f32 0.0, %v331
      %v362 = vsub.f32 0.0, %v333
      %v363 = vsub.f32 0.0, %v336
      %v364 = vsub.f32 0.0, %v338
      %v365 = vsub.f32 0.0, %v341
      %v366 = vsub.f32 0.0, %v343
      %v367 = vsub.f32 0.0, %v346
      %v368 = vsub.f32 0.0, %v348
      %v369 = vsub.f32 0.0, %v351
      %v370 = vsub.f32 0.0, %v353
      %v371 = vmul.f32 %v355, 1.442695
      %v372 = vpow.pop %v371
      %v373 = vmul.f32 %v356, 1.442695
      %v374 = vpow.pop %v373
      %v375 = vmul.f32 %v357, 1.442695
      %v376 = vpow.pop %v375
      %v377 = vmul.f32 %v358, 1.442695
      %v378 = vpow.pop %v377
      %v379 = vmul.f32 %v359, 1.442695
      %v380 = vpow.pop %v379
      %v381 = vmul.f32 %v360, 1.442695
      %v382 = vpow.pop %v381
      %v383 = vmul.f32 %v361, 1.442695
      %v384 = vpow.pop %v383
      %v385 = vmul.f32 %v362, 1.442695
      %v386 = vpow.pop %v385
      %v387 = vmul.f32 %v363, 1.442695
      %v388 = vpow.pop %v387
      %v389 = vmul.f32 %v364, 1.442695
      %v390 = vpow.pop %v389
      %v391 = vmul.f32 %v365, 1.442695
      %v392 = vpow.pop %v391
      %v393 = vmul.f32 %v366, 1.442695
      %v394 = vpow.pop %v393
      %v395 = vmul.f32 %v367, 1.442695
      %v396 = vpow.pop %v395
      %v397 = vmul.f32 %v368, 1.442695
      %v398 = vpow.pop %v397
      %v399 = vmul.f32 %v369, 1.442695
      %v400 = vpow.pop %v399
      %v401 = vmul.f32 %v370, 1.442695
      %v402 = vpow.pop %v401
      %v403 = vadd.f32 %v372, 1.0
      %v404 = vadd.f32 %v374, 1.0
      %v405 = vadd.f32 %v376, 1.0
      %v406 = vadd.f32 %v378, 1.0
      %v407 = vadd.f32 %v380, 1.0
      %v408 = vadd.f32 %v382, 1.0
      %v409 = vadd.f32 %v384, 1.0
      %v410 = vadd.f32 %v386, 1.0
      %v411 = vadd.f32 %v388, 1.0
      %v412 = vadd.f32 %v390, 1.0
      %v413 = vadd.f32 %v392, 1.0
      %v414 = vadd.f32 %v394, 1.0
      %v415 = vadd.f32 %v396, 1.0
      %v416 = vadd.f32 %v398, 1.0
      %v417 = vadd.f32 %v400, 1.0
      %v418 = vadd.f32 %v402, 1.0
      %v419 = vrcp.pop %v403
      %v420 = vrcp.pop %v404
      %v421 = vrcp.pop %v405
      %v422 = vrcp.pop %v406
      %v423 = vrcp.pop %v407
      %v424 = vrcp.pop %v408
      %v425 = vrcp.pop %v409
      %v426 = vrcp.pop %v410
      %v427 = vrcp.pop %v411
      %v428 = vrcp.pop %v412
      %v429 = vrcp.pop %v413
      %v430 = vrcp.pop %v414
      %v431 = vrcp.pop %v415
      %v432 = vrcp.pop %v416
      %v433 = vrcp.pop %v417
      %v434 = vrcp.pop %v418
      %v435 = vmul.f32 %v316, %v419
      %v436 = vmul.f32 %v318, %v420
      %v437 = vmul.f32 %v321, %v421
      %v438 = vmul.f32 %v323, %v422
      %v439 = vmul.f32 %v326, %v423
      %v440 = vmul.f32 %v328, %v424
      %v441 = vmul.f32 %v331, %v425
      %v442 = vmul.f32 %v333, %v426
      %v443 = vmul.f32 %v336, %v427
      %v444 = vmul.f32 %v338, %v428
      %v445 = vmul.f32 %v341, %v429
      %v446 = vmul.f32 %v343, %v430
      %v447 = vmul.f32 %v346, %v431
      %v448 = vmul.f32 %v348, %v432
      %v449 = vmul.f32 %v351, %v433
      %v450 = vmul.f32 %v353, %v434
      %v451 = vpack.c.bf16 %v436, %v435
      %v452 = vpack.c.bf16 %v438, %v437
      %v453 = vpack.c.bf16 %v440, %v439
      %v454 = vpack.c.bf16 %v442, %v441
      %v455 = vpack.c.bf16 %v444, %v443
      %v456 = vpack.c.bf16 %v446, %v445
      %v457 = vpack.c.bf16 %v448, %v447
      %v458 = vpack.c.bf16 %v450, %v449
      %s459 = scalar_lea.vmem %s1, 64
      %v460 = vld [vmem:[%s459] sm:$0xf]
      %v461 = vld [vmem:[%s459 + $0x4] sm:$0xf]
      %v462 = vld [vmem:[%s459 + $0x8] sm:$0xf]
      %v463 = vld [vmem:[%s459 + $0xc] sm:$0xf]
      %v464 = vld [vmem:[%s459 + $0x10] sm:$0xf]
      %v465 = vld [vmem:[%s459 + $0x14] sm:$0xf]
      %v466 = vld [vmem:[%s459 + $0x18] sm:$0xf]
      %v467 = vld [vmem:[%s459 + $0x1c] sm:$0xf]
      %v468 = vld [vmem:[%s459 + $0x20] sm:$0xf]
      %v469 = vld [vmem:[%s459 + $0x24] sm:$0xf]
      %v470 = vld [vmem:[%s459 + $0x28] sm:$0xf]
      %v471 = vld [vmem:[%s459 + $0x2c] sm:$0xf]
      %v472 = vld [vmem:[%s459 + $0x30] sm:$0xf]
      %v473 = vld [vmem:[%s459 + $0x34] sm:$0xf]
      %v474 = vld [vmem:[%s459 + $0x38] sm:$0xf]
      %v475 = vld [vmem:[%s459 + $0x3c] sm:$0xf]
      %s476 = scalar_lea.vmem %s2, 1
      %v477 = vld [vmem:[%s476] sm:$0x1]
      %v479 = vperm.slane %v477, 0
      %v497 = vunpack.c.l.b16 %v460
      %v498 = vunpack.c.l.b16 %v461
      %v499 = vunpack.c.l.b16 %v462
      %v500 = vunpack.c.l.b16 %v463
      %v501 = vunpack.c.l.b16 %v464
      %v502 = vunpack.c.l.b16 %v465
      %v503 = vunpack.c.l.b16 %v466
      %v504 = vunpack.c.l.b16 %v467
      %v505 = vunpack.c.l.b16 %v468
      %v506 = vunpack.c.l.b16 %v469
      %v507 = vunpack.c.l.b16 %v470
      %v508 = vunpack.c.l.b16 %v471
      %v509 = vunpack.c.l.b16 %v472
      %v510 = vunpack.c.l.b16 %v473
      %v511 = vunpack.c.l.b16 %v474
      %v512 = vunpack.c.l.b16 %v475
      %v513 = vpack.c.b16 %v498, %v497
      %v514 = vpack.c.b16 %v500, %v499
      %v515 = vpack.c.b16 %v502, %v501
      %v516 = vpack.c.b16 %v504, %v503
      %v517 = vpack.c.b16 %v506, %v505
      %v518 = vpack.c.b16 %v508, %v507
      %v519 = vpack.c.b16 %v510, %v509
      %v520 = vpack.c.b16 %v512, %v511
      %529 = vmatpush.bf16.msra.mxu0 %v520
      %530 = vmatpush.bf16.msra.mxu0 %v519
      %531 = vmatpush.bf16.msra.mxu0 %v518
      %532 = vmatpush.bf16.msra.mxu0 %v517
      %533 = vmatpush.bf16.msra.mxu0 %v516
      %534 = vmatpush.bf16.msra.mxu0 %v515
      %535 = vmatpush.bf16.msra.mxu0 %v514
      %536 = vmatpush.bf16.msra.mxu0 %v513
      %537 = vmatmul.bf16.gmra.mxu0 %v451
      %v538 = vpop.f32.mrf.mxu0
      %v539 = vadd.f32 %v479, %v538
      %v540 = vpop.f32.mrf.mxu0
      %v541 = vadd.f32 %v479, %v540
      %542 = vmatmul.bf16.gmra.mxu0 %v452
      %v543 = vpop.f32.mrf.mxu0
      %v544 = vadd.f32 %v479, %v543
      %v545 = vpop.f32.mrf.mxu0
      %v546 = vadd.f32 %v479, %v545
      %547 = vmatmul.bf16.gmra.mxu0 %v453
      %v548 = vpop.f32.mrf.mxu0
      %v549 = vadd.f32 %v479, %v548
      %v550 = vpop.f32.mrf.mxu0
      %v551 = vadd.f32 %v479, %v550
      %552 = vmatmul.bf16.gmra.mxu0 %v454
      %v553 = vpop.f32.mrf.mxu0
      %v554 = vadd.f32 %v479, %v553
      %v555 = vpop.f32.mrf.mxu0
      %v556 = vadd.f32 %v479, %v555
      %557 = vmatmul.bf16.gmra.mxu0 %v455
      %v558 = vpop.f32.mrf.mxu0
      %v559 = vadd.f32 %v479, %v558
      %v560 = vpop.f32.mrf.mxu0
      %v561 = vadd.f32 %v479, %v560
      %562 = vmatmul.bf16.gmra.mxu0 %v456
      %v563 = vpop.f32.mrf.mxu0
      %v564 = vadd.f32 %v479, %v563
      %v565 = vpop.f32.mrf.mxu0
      %v566 = vadd.f32 %v479, %v565
      %567 = vmatmul.bf16.gmra.mxu0 %v457
      %v568 = vpop.f32.mrf.mxu0
      %v569 = vadd.f32 %v479, %v568
      %v570 = vpop.f32.mrf.mxu0
      %v571 = vadd.f32 %v479, %v570
      %572 = vmatmul.bf16.gmra.mxu0 %v458
      %v573 = vpop.f32.mrf.mxu0
      %v574 = vadd.f32 %v479, %v573
      %v575 = vpop.f32.mrf.mxu0
      %v576 = vadd.f32 %v479, %v575
      %577 = vdwg.mxu0
      %v578 = vsub.f32 0.0, %v539
      %v579 = vsub.f32 0.0, %v541
      %v580 = vsub.f32 0.0, %v544
      %v581 = vsub.f32 0.0, %v546
      %v582 = vsub.f32 0.0, %v549
      %v583 = vsub.f32 0.0, %v551
      %v584 = vsub.f32 0.0, %v554
      %v585 = vsub.f32 0.0, %v556
      %v586 = vsub.f32 0.0, %v559
      %v587 = vsub.f32 0.0, %v561
      %v588 = vsub.f32 0.0, %v564
      %v589 = vsub.f32 0.0, %v566
      %v590 = vsub.f32 0.0, %v569
      %v591 = vsub.f32 0.0, %v571
      %v592 = vsub.f32 0.0, %v574
      %v593 = vsub.f32 0.0, %v576
      %v594 = vmul.f32 %v578, 1.442695
      %v595 = vpow.pop %v594
      %v596 = vmul.f32 %v579, 1.442695
      %v597 = vpow.pop %v596
      %v598 = vmul.f32 %v580, 1.442695
      %v599 = vpow.pop %v598
      %v600 = vmul.f32 %v581, 1.442695
      %v601 = vpow.pop %v600
      %v602 = vmul.f32 %v582, 1.442695
      %v603 = vpow.pop %v602
      %v604 = vmul.f32 %v583, 1.442695
      %v605 = vpow.pop %v604
      %v606 = vmul.f32 %v584, 1.442695
      %v607 = vpow.pop %v606
      %v608 = vmul.f32 %v585, 1.442695
      %v609 = vpow.pop %v608
      %v610 = vmul.f32 %v586, 1.442695
      %v611 = vpow.pop %v610
      %v612 = vmul.f32 %v587, 1.442695
      %v613 = vpow.pop %v612
      %v614 = vmul.f32 %v588, 1.442695
      %v615 = vpow.pop %v614
      %v616 = vmul.f32 %v589, 1.442695
      %v617 = vpow.pop %v616
      %v618 = vmul.f32 %v590, 1.442695
      %v619 = vpow.pop %v618
      %v620 = vmul.f32 %v591, 1.442695
      %v621 = vpow.pop %v620
      %v622 = vmul.f32 %v592, 1.442695
      %v623 = vpow.pop %v622
      %v624 = vmul.f32 %v593, 1.442695
      %v625 = vpow.pop %v624
      %v626 = vadd.f32 %v595, 1.0
      %v627 = vadd.f32 %v597, 1.0
      %v628 = vadd.f32 %v599, 1.0
      %v629 = vadd.f32 %v601, 1.0
      %v630 = vadd.f32 %v603, 1.0
      %v631 = vadd.f32 %v605, 1.0
      %v632 = vadd.f32 %v607, 1.0
      %v633 = vadd.f32 %v609, 1.0
      %v634 = vadd.f32 %v611, 1.0
      %v635 = vadd.f32 %v613, 1.0
      %v636 = vadd.f32 %v615, 1.0
      %v637 = vadd.f32 %v617, 1.0
      %v638 = vadd.f32 %v619, 1.0
      %v639 = vadd.f32 %v621, 1.0
      %v640 = vadd.f32 %v623, 1.0
      %v641 = vadd.f32 %v625, 1.0
      %v642 = vrcp.pop %v626
      %v643 = vrcp.pop %v627
      %v644 = vrcp.pop %v628
      %v645 = vrcp.pop %v629
      %v646 = vrcp.pop %v630
      %v647 = vrcp.pop %v631
      %v648 = vrcp.pop %v632
      %v649 = vrcp.pop %v633
      %v650 = vrcp.pop %v634
      %v651 = vrcp.pop %v635
      %v652 = vrcp.pop %v636
      %v653 = vrcp.pop %v637
      %v654 = vrcp.pop %v638
      %v655 = vrcp.pop %v639
      %v656 = vrcp.pop %v640
      %v657 = vrcp.pop %v641
      %v658 = vmul.f32 %v539, %v642
      %v659 = vmul.f32 %v541, %v643
      %v660 = vmul.f32 %v544, %v644
      %v661 = vmul.f32 %v546, %v645
      %v662 = vmul.f32 %v549, %v646
      %v663 = vmul.f32 %v551, %v647
      %v664 = vmul.f32 %v554, %v648
      %v665 = vmul.f32 %v556, %v649
      %v666 = vmul.f32 %v559, %v650
      %v667 = vmul.f32 %v561, %v651
      %v668 = vmul.f32 %v564, %v652
      %v669 = vmul.f32 %v566, %v653
      %v670 = vmul.f32 %v569, %v654
      %v671 = vmul.f32 %v571, %v655
      %v672 = vmul.f32 %v574, %v656
      %v673 = vmul.f32 %v576, %v657
      %v674 = vpack.c.bf16 %v659, %v658
      %v675 = vpack.c.bf16 %v661, %v660
      %v676 = vpack.c.bf16 %v663, %v662
      %v677 = vpack.c.bf16 %v665, %v664
      %v678 = vpack.c.bf16 %v667, %v666
      %v679 = vpack.c.bf16 %v669, %v668
      %v680 = vpack.c.bf16 %v671, %v670
      %v681 = vpack.c.bf16 %v673, %v672
      %s682 = scalar_lea.vmem %s1, 128
      %v683 = vld [vmem:[%s682] sm:$0xf]
      %v684 = vld [vmem:[%s682 + $0x4] sm:$0xf]
      %v685 = vld [vmem:[%s682 + $0x8] sm:$0xf]
      %v686 = vld [vmem:[%s682 + $0xc] sm:$0xf]
      %v687 = vld [vmem:[%s682 + $0x10] sm:$0xf]
      %v688 = vld [vmem:[%s682 + $0x14] sm:$0xf]
      %v689 = vld [vmem:[%s682 + $0x18] sm:$0xf]
      %v690 = vld [vmem:[%s682 + $0x1c] sm:$0xf]
      %v691 = vld [vmem:[%s682 + $0x20] sm:$0xf]
      %v692 = vld [vmem:[%s682 + $0x24] sm:$0xf]
      %v693 = vld [vmem:[%s682 + $0x28] sm:$0xf]
      %v694 = vld [vmem:[%s682 + $0x2c] sm:$0xf]
      %v695 = vld [vmem:[%s682 + $0x30] sm:$0xf]
      %v696 = vld [vmem:[%s682 + $0x34] sm:$0xf]
      %v697 = vld [vmem:[%s682 + $0x38] sm:$0xf]
      %v698 = vld [vmem:[%s682 + $0x3c] sm:$0xf]
      %s699 = scalar_lea.vmem %s2, 2
      %v700 = vld [vmem:[%s699] sm:$0x1]
      %v702 = vperm.slane %v700, 0
      %v720 = vunpack.c.l.b16 %v683
      %v721 = vunpack.c.l.b16 %v684
      %v722 = vunpack.c.l.b16 %v685
      %v723 = vunpack.c.l.b16 %v686
      %v724 = vunpack.c.l.b16 %v687
      %v725 = vunpack.c.l.b16 %v688
      %v726 = vunpack.c.l.b16 %v689
      %v727 = vunpack.c.l.b16 %v690
      %v728 = vunpack.c.l.b16 %v691
      %v729 = vunpack.c.l.b16 %v692
      %v730 = vunpack.c.l.b16 %v693
      %v731 = vunpack.c.l.b16 %v694
      %v732 = vunpack.c.l.b16 %v695
      %v733 = vunpack.c.l.b16 %v696
      %v734 = vunpack.c.l.b16 %v697
      %v735 = vunpack.c.l.b16 %v698
      %v736 = vpack.c.b16 %v721, %v720
      %v737 = vpack.c.b16 %v723, %v722
      %v738 = vpack.c.b16 %v725, %v724
      %v739 = vpack.c.b16 %v727, %v726
      %v740 = vpack.c.b16 %v729, %v728
      %v741 = vpack.c.b16 %v731, %v730
      %v742 = vpack.c.b16 %v733, %v732
      %v743 = vpack.c.b16 %v735, %v734
      %752 = vmatpush.bf16.msra.mxu0 %v743
      %753 = vmatpush.bf16.msra.mxu0 %v742
      %754 = vmatpush.bf16.msra.mxu0 %v741
      %755 = vmatpush.bf16.msra.mxu0 %v740
      %756 = vmatpush.bf16.msra.mxu0 %v739
      %757 = vmatpush.bf16.msra.mxu0 %v738
      %758 = vmatpush.bf16.msra.mxu0 %v737
      %759 = vmatpush.bf16.msra.mxu0 %v736
      %760 = vmatmul.bf16.gmra.mxu0 %v674
      %v761 = vpop.f32.mrf.mxu0
      %v762 = vadd.f32 %v702, %v761
      %v763 = vpop.f32.mrf.mxu0
      %v764 = vadd.f32 %v702, %v763
      %765 = vmatmul.bf16.gmra.mxu0 %v675
      %v766 = vpop.f32.mrf.mxu0
      %v767 = vadd.f32 %v702, %v766
      %v768 = vpop.f32.mrf.mxu0
      %v769 = vadd.f32 %v702, %v768
      %770 = vmatmul.bf16.gmra.mxu0 %v676
      %v771 = vpop.f32.mrf.mxu0
      %v772 = vadd.f32 %v702, %v771
      %v773 = vpop.f32.mrf.mxu0
      %v774 = vadd.f32 %v702, %v773
      %775 = vmatmul.bf16.gmra.mxu0 %v677
      %v776 = vpop.f32.mrf.mxu0
      %v777 = vadd.f32 %v702, %v776
      %v778 = vpop.f32.mrf.mxu0
      %v779 = vadd.f32 %v702, %v778
      %780 = vmatmul.bf16.gmra.mxu0 %v678
      %v781 = vpop.f32.mrf.mxu0
      %v782 = vadd.f32 %v702, %v781
      %v783 = vpop.f32.mrf.mxu0
      %v784 = vadd.f32 %v702, %v783
      %785 = vmatmul.bf16.gmra.mxu0 %v679
      %v786 = vpop.f32.mrf.mxu0
      %v787 = vadd.f32 %v702, %v786
      %v788 = vpop.f32.mrf.mxu0
      %v789 = vadd.f32 %v702, %v788
      %790 = vmatmul.bf16.gmra.mxu0 %v680
      %v791 = vpop.f32.mrf.mxu0
      %v792 = vadd.f32 %v702, %v791
      %v793 = vpop.f32.mrf.mxu0
      %v794 = vadd.f32 %v702, %v793
      %795 = vmatmul.bf16.gmra.mxu0 %v681
      %v796 = vpop.f32.mrf.mxu0
      %v797 = vadd.f32 %v702, %v796
      %v798 = vpop.f32.mrf.mxu0
      %v799 = vadd.f32 %v702, %v798
      %800 = vdwg.mxu0
      %v801 = vlaneseq
      %v802 = vand.u32 %v801, 127
      %vm803 = vcmp.lt.s32.totalorder %v802, 2
      %v804 = vsel %vm803, %v762, -1e+30
      %v805 = vsel %vm803, %v764, -1e+30
      %v806 = vsel %vm803, %v767, -1e+30
      %v807 = vsel %vm803, %v769, -1e+30
      %v808 = vsel %vm803, %v772, -1e+30
      %v809 = vsel %vm803, %v774, -1e+30
      %v810 = vsel %vm803, %v777, -1e+30
      %v811 = vsel %vm803, %v779, -1e+30
      %v812 = vsel %vm803, %v782, -1e+30
      %v813 = vsel %vm803, %v784, -1e+30
      %v814 = vsel %vm803, %v787, -1e+30
      %v815 = vsel %vm803, %v789, -1e+30
      %v816 = vsel %vm803, %v792, -1e+30
      %v817 = vsel %vm803, %v794, -1e+30
      %v818 = vsel %vm803, %v797, -1e+30
      %v819 = vsel %vm803, %v799, -1e+30
      %820 = vmax.xlane.f32.xlu0 %v804
      %v821 = vpop.xlane.xlu0 %820
      %822 = vmax.xlane.f32.xlu0 %v805
      %v823 = vpop.xlane.xlu0 %822
      %824 = vmax.xlane.f32.xlu0 %v806
      %v825 = vpop.xlane.xlu0 %824
      %826 = vmax.xlane.f32.xlu0 %v807
      %v827 = vpop.xlane.xlu0 %826
      %828 = vmax.xlane.f32.xlu0 %v808
      %v829 = vpop.xlane.xlu0 %828
      %830 = vmax.xlane.f32.xlu0 %v809
      %v831 = vpop.xlane.xlu0 %830
      %832 = vmax.xlane.f32.xlu0 %v810
      %v833 = vpop.xlane.xlu0 %832
      %834 = vmax.xlane.f32.xlu0 %v811
      %v835 = vpop.xlane.xlu0 %834
      %836 = vmax.xlane.f32.xlu0 %v812
      %v837 = vpop.xlane.xlu0 %836
      %838 = vmax.xlane.f32.xlu0 %v813
      %v839 = vpop.xlane.xlu0 %838
      %840 = vmax.xlane.f32.xlu0 %v814
      %v841 = vpop.xlane.xlu0 %840
      %842 = vmax.xlane.f32.xlu0 %v815
      %v843 = vpop.xlane.xlu0 %842
      %844 = vmax.xlane.f32.xlu0 %v816
      %v845 = vpop.xlane.xlu0 %844
      %846 = vmax.xlane.f32.xlu0 %v817
      %v847 = vpop.xlane.xlu0 %846
      %848 = vmax.xlane.f32.xlu0 %v818
      %v849 = vpop.xlane.xlu0 %848
      %850 = vmax.xlane.f32.xlu0 %v819
      %v851 = vpop.xlane.xlu0 %850
      %v852 = vsub.f32 %v804, %v821
      %v853 = vsub.f32 %v805, %v823
      %v854 = vsub.f32 %v806, %v825
      %v855 = vsub.f32 %v807, %v827
      %v856 = vsub.f32 %v808, %v829
      %v857 = vsub.f32 %v809, %v831
      %v858 = vsub.f32 %v810, %v833
      %v859 = vsub.f32 %v811, %v835
      %v860 = vsub.f32 %v812, %v837
      %v861 = vsub.f32 %v813, %v839
      %v862 = vsub.f32 %v814, %v841
      %v863 = vsub.f32 %v815, %v843
      %v864 = vsub.f32 %v816, %v845
      %v865 = vsub.f32 %v817, %v847
      %v866 = vsub.f32 %v818, %v849
      %v867 = vsub.f32 %v819, %v851
      %v868 = vmul.f32 %v852, 1.442695
      %v869 = vpow.pop %v868
      %v870 = vmul.f32 %v853, 1.442695
      %v871 = vpow.pop %v870
      %v872 = vmul.f32 %v854, 1.442695
      %v873 = vpow.pop %v872
      %v874 = vmul.f32 %v855, 1.442695
      %v875 = vpow.pop %v874
      %v876 = vmul.f32 %v856, 1.442695
      %v877 = vpow.pop %v876
      %v878 = vmul.f32 %v857, 1.442695
      %v879 = vpow.pop %v878
      %v880 = vmul.f32 %v858, 1.442695
      %v881 = vpow.pop %v880
      %v882 = vmul.f32 %v859, 1.442695
      %v883 = vpow.pop %v882
      %v884 = vmul.f32 %v860, 1.442695
      %v885 = vpow.pop %v884
      %v886 = vmul.f32 %v861, 1.442695
      %v887 = vpow.pop %v886
      %v888 = vmul.f32 %v862, 1.442695
      %v889 = vpow.pop %v888
      %v890 = vmul.f32 %v863, 1.442695
      %v891 = vpow.pop %v890
      %v892 = vmul.f32 %v864, 1.442695
      %v893 = vpow.pop %v892
      %v894 = vmul.f32 %v865, 1.442695
      %v895 = vpow.pop %v894
      %v896 = vmul.f32 %v866, 1.442695
      %v897 = vpow.pop %v896
      %v898 = vmul.f32 %v867, 1.442695
      %v899 = vpow.pop %v898
      %900 = vadd.xlane.f32.xlu0 %v869
      %v901 = vpop.xlane.xlu0 %900
      %902 = vadd.xlane.f32.xlu0 %v871
      %v903 = vpop.xlane.xlu0 %902
      %904 = vadd.xlane.f32.xlu0 %v873
      %v905 = vpop.xlane.xlu0 %904
      %906 = vadd.xlane.f32.xlu0 %v875
      %v907 = vpop.xlane.xlu0 %906
      %908 = vadd.xlane.f32.xlu0 %v877
      %v909 = vpop.xlane.xlu0 %908
      %910 = vadd.xlane.f32.xlu0 %v879
      %v911 = vpop.xlane.xlu0 %910
      %912 = vadd.xlane.f32.xlu0 %v881
      %v913 = vpop.xlane.xlu0 %912
      %914 = vadd.xlane.f32.xlu0 %v883
      %v915 = vpop.xlane.xlu0 %914
      %916 = vadd.xlane.f32.xlu0 %v885
      %v917 = vpop.xlane.xlu0 %916
      %918 = vadd.xlane.f32.xlu0 %v887
      %v919 = vpop.xlane.xlu0 %918
      %920 = vadd.xlane.f32.xlu0 %v889
      %v921 = vpop.xlane.xlu0 %920
      %922 = vadd.xlane.f32.xlu0 %v891
      %v923 = vpop.xlane.xlu0 %922
      %924 = vadd.xlane.f32.xlu0 %v893
      %v925 = vpop.xlane.xlu0 %924
      %926 = vadd.xlane.f32.xlu0 %v895
      %v927 = vpop.xlane.xlu0 %926
      %928 = vadd.xlane.f32.xlu0 %v897
      %v929 = vpop.xlane.xlu0 %928
      %930 = vadd.xlane.f32.xlu0 %v899
      %v931 = vpop.xlane.xlu0 %930
      %v932 = vlog2.pop %v901
      %v933 = vmul.f32 %v932, 0.6931472
      %v934 = vlog2.pop %v903
      %v935 = vmul.f32 %v934, 0.6931472
      %v936 = vlog2.pop %v905
      %v937 = vmul.f32 %v936, 0.6931472
      %v938 = vlog2.pop %v907
      %v939 = vmul.f32 %v938, 0.6931472
      %v940 = vlog2.pop %v909
      %v941 = vmul.f32 %v940, 0.6931472
      %v942 = vlog2.pop %v911
      %v943 = vmul.f32 %v942, 0.6931472
      %v944 = vlog2.pop %v913
      %v945 = vmul.f32 %v944, 0.6931472
      %v946 = vlog2.pop %v915
      %v947 = vmul.f32 %v946, 0.6931472
      %v948 = vlog2.pop %v917
      %v949 = vmul.f32 %v948, 0.6931472
      %v950 = vlog2.pop %v919
      %v951 = vmul.f32 %v950, 0.6931472
      %v952 = vlog2.pop %v921
      %v953 = vmul.f32 %v952, 0.6931472
      %v954 = vlog2.pop %v923
      %v955 = vmul.f32 %v954, 0.6931472
      %v956 = vlog2.pop %v925
      %v957 = vmul.f32 %v956, 0.6931472
      %v958 = vlog2.pop %v927
      %v959 = vmul.f32 %v958, 0.6931472
      %v960 = vlog2.pop %v929
      %v961 = vmul.f32 %v960, 0.6931472
      %v962 = vlog2.pop %v931
      %v963 = vmul.f32 %v962, 0.6931472
      %v964 = vsub.f32 %v852, %v933
      %v965 = vsub.f32 %v853, %v935
      %v966 = vsub.f32 %v854, %v937
      %v967 = vsub.f32 %v855, %v939
      %v968 = vsub.f32 %v856, %v941
      %v969 = vsub.f32 %v857, %v943
      %v970 = vsub.f32 %v858, %v945
      %v971 = vsub.f32 %v859, %v947
      %v972 = vsub.f32 %v860, %v949
      %v973 = vsub.f32 %v861, %v951
      %v974 = vsub.f32 %v862, %v953
      %v975 = vsub.f32 %v863, %v955
      %v976 = vsub.f32 %v864, %v957
      %v977 = vsub.f32 %v865, %v959
      %v978 = vsub.f32 %v866, %v961
      %v979 = vsub.f32 %v867, %v963
      %980 = vst [vmem:[%s172] sm:$0xff] %v964
      %981 = vst [vmem:[%s172 + $0x8] sm:$0xff] %v965
      %982 = vst [vmem:[%s172 + $0x10] sm:$0xff] %v966
      %983 = vst [vmem:[%s172 + $0x18] sm:$0xff] %v967
      %984 = vst [vmem:[%s172 + $0x20] sm:$0xff] %v968
      %985 = vst [vmem:[%s172 + $0x28] sm:$0xff] %v969
      %986 = vst [vmem:[%s172 + $0x30] sm:$0xff] %v970
      %987 = vst [vmem:[%s172 + $0x38] sm:$0xff] %v971
      %988 = vst [vmem:[%s172 + $0x40] sm:$0xff] %v972
      %989 = vst [vmem:[%s172 + $0x48] sm:$0xff] %v973
      %990 = vst [vmem:[%s172 + $0x50] sm:$0xff] %v974
      %991 = vst [vmem:[%s172 + $0x58] sm:$0xff] %v975
      %992 = vst [vmem:[%s172 + $0x60] sm:$0xff] %v976
      %993 = vst [vmem:[%s172 + $0x68] sm:$0xff] %v977
      %994 = vst [vmem:[%s172 + $0x70] sm:$0xff] %v978
      %995 = vst [vmem:[%s172 + $0x78] sm:$0xff] %v979
      %s996 = smul.u32 16, %s14
      %p997 = scmp.lt.s32.totalorder %s996, 31
      %s998 = scalar_select %p997, %s996, 31
      %s999 = smul.addr %s998, 8
      %s1000 = scalar_lea.vmem %s3, %s999
      // Predicated region
      $region33: #{mlp_forward.1} parent=31 // pred_check
        %p1001 = pneg %p100
      $region34: #{mlp_forward.1} parent=31 // pred_check_branch
        %1003 = sbr.rel (%p1001) target = $region36
      $region35: #{mlp_forward.1} parent=31 // pred_region
        %s1004 = smul.u32 16, %s14
      $region36: #{mlp_forward.1} parent=31 // pred_fallthru
        _
    $region32: #{mlp_forward.1} parent=5 // pred_fallthru
      _
    %p1005 = scmp.le.s32.totalorder 2, %s9
    // Predicated region
    $region37: #{mlp_forward.1} parent=5 // pred_check
      %p1006 = pneg %p1005
    $region38: #{mlp_forward.1} parent=5 // pred_check_branch
      %1008 = sbr.rel (%p1006) target = $region40
    $region39: #{mlp_forward.1} parent=5 // pred_region
      %s1009 = ssub.s32 %s9, 2
      // Predicated region
      $region41: #{mlp_forward.1} parent=39 // pred_check
        %p1010 = pneg %p106
      $region42: #{mlp_forward.1} parent=39 // pred_check_branch
        %1012 = sbr.rel (%p1010) target = $region44
      $region43: #{mlp_forward.1} parent=39 // pred_region
        %s1013 = smul.u32 16, %s15
        %p1014 = scmp.lt.s32.totalorder %s1013, 31
        %s1015 = scalar_select %p1014, %s1013, 31
        %s1016 = smul.addr %s1015, 8
        %s1017 = scalar_lea.vmem %s3, %s1016
      $region44: #{mlp_forward.1} parent=39 // pred_fallthru
        _
    $region40: #{mlp_forward.1} parent=5 // pred_fallthru
      _
  $region6: #{mlp_forward.1} parent=0 // loop_footer
    %s13 = sadd.s32 1, %s9
  $region7: #{mlp_forward.1} parent=0 // loop_footer_branch
    %8 = sbr.rel target = $region3
  $region8: #{mlp_forward.1} parent=0 // loop_exit
    _

</llo_original>
